<compile_context>
chip_gen: v6e
topology: v6e:2x2x1
jax: 0.10.0
libtpu: 0.0.40
codegen_flags: <defaults>
</compile_context>

<pallas_src>
import jax
import jax.numpy as jnp
from jax.experimental import pallas as pl
from jax.experimental.pallas import tpu as pltpu

_LANE = 128
_SUBLANE = 8


def _round_up(v, m):
    return ((v + m - 1) // m) * m


# ---------------------------------------------------------------------------
# Kernels: out = x @ W  (W pre-transposed to (K, Nout) layout)  [- bias]
# ---------------------------------------------------------------------------
def _inv_linear_bias_kernel(x_ref, w_ref, b_ref, o_ref):
    x = x_ref[...].astype(w_ref.dtype)            # explicit MXU operand dtype
    acc = jnp.dot(x, w_ref[...], preferred_element_type=jnp.float32)
    o_ref[...] = (acc - b_ref[...]).astype(o_ref.dtype)   # (1, TN) broadcasts


def _inv_linear_nobias_kernel(x_ref, w_ref, o_ref):
    x = x_ref[...].astype(w_ref.dtype)
    acc = jnp.dot(x, w_ref[...], preferred_element_type=jnp.float32)
    o_ref[...] = acc.astype(o_ref.dtype)


def init_inverse_linear(weight, biases=None, *, check_invertible=True):
    """Mirror of InverseLinear.__init__ (one-time setup, plain XLA linalg).

    The invertibility check uses slogdet (raw det under/overflows for moderate
    N) and forces a host sync, so it is optional and not jit-friendly.
    """
    if check_invertible:
        sign, logabsdet = jnp.linalg.slogdet(weight)
        if float(sign) == 0.0 or not bool(jnp.isfinite(logabsdet)):
            raise ValueError("The weight matrix is not invertible.")
    inverse_matrix = jnp.linalg.inv(weight)
    return inverse_matrix, biases


def inverse_linear_forward(
    x,
    inverse_matrix,
    biases=None,
    *,
    block_b=512,                        # batch tile (sweepable)
    block_n=512,                        # weight-column tile for the big-N path
    compute_dtype=jnp.float32,          # jnp.bfloat16 for compute-bound large N
    max_resident_weight_bytes=24 << 20, # above this, column-tile the weight
    single_buffer_resident=True,
    return_padded=False,
):
    """Pallas forward of InverseLinear: x @ inverse_matrix.T - biases."""
    B, N = x.shape
    assert inverse_matrix.shape == (N, N), inverse_matrix.shape

    out_dtype = x.dtype
    compute_dtype = jnp.dtype(compute_dtype)

    # --- weight / bias prepared once: (K=N, Nout=Np), lane-dense columns -----
    Np = _round_up(N, _LANE)
    pad_n = Np - N
    w_t = inverse_matrix.T.astype(compute_dtype)        # x @ w_t == x @ inv.T
    if pad_n:
        w_t = jnp.pad(w_t, ((0, 0), (0, pad_n)))        # pad output cols only
    has_bias = biases is not None
    b_2d = None
    if has_bias:
        b_2d = biases.reshape(1, -1).astype(jnp.float32)  # f32: only subtracted
        if pad_n:
            b_2d = jnp.pad(b_2d, ((0, 0), (0, pad_n)))

    # --- batch tiling: no padding/copy of x; ragged last block is masked -----
    TB = int(min(block_b, B))
    if TB < B:
        TB = max(_SUBLANE, (TB // _SUBLANE) * _SUBLANE)
    if B > _SUBLANE and TB >= B:
        # guarantee >= 2 grid steps so v7x can use both TensorCores
        TB = _round_up(-(-B // 2), _SUBLANE)
    nb = pl.cdiv(B, TB)

    # --- column tiling only when the resident weight would not fit in VMEM ---
    w_bytes = N * Np * compute_dtype.itemsize
    if w_bytes <= max_resident_weight_bytes:
        TN, nc = Np, 1
    else:
        TN = min(_round_up(block_n, _LANE), Np)
        nc = pl.cdiv(Np, TN)

    # --- explicit VMEM budget (v5e's default scoped limit is only 16 MiB) ----
    x_stream = 2 * TB * N * x.dtype.itemsize                  # double-buffered
    o_stream = 2 * TB * TN * jnp.dtype(out_dtype).itemsize
    w_buf = 1 if (nc == 1 and single_buffer_resident) else 2
    wb_bytes = w_buf * (N * TN * compute_dtype.itemsize + TN * 4)
    needed = x_stream + o_stream + wb_bytes
    vmem_limit = int(min(max(needed + needed // 4 + (2 << 20), 32 << 20),
                         64 << 20))

    out_shape = jax.ShapeDtypeStruct((B, Np), out_dtype)
    kernel = _inv_linear_bias_kernel if has_bias else _inv_linear_nobias_kernel
    args = (x, w_t, b_2d) if has_bias else (x, w_t)

    def call(single_buffer):
        def resident(block_shape, index_map):
            if single_buffer:
                return pl.BlockSpec(block_shape, index_map,
                                    pipeline_mode=pl.Buffered(1))
            return pl.BlockSpec(block_shape, index_map)

        if nc == 1:
            # 1-D grid over the batch; weight + bias stay VMEM-resident.
            grid = (nb,)
            x_spec = pl.BlockSpec((TB, N), lambda i: (i, 0))
            w_spec = resident((N, Np), lambda i: (0, 0))
            b_spec = resident((1, Np), lambda i: (0, 0))
            o_spec = pl.BlockSpec((TB, Np), lambda i: (i, 0))
            dims = ("parallel",)
        else:
            # 2-D grid: weight columns outer (each weight tile fetched once),
            # batch inner (x re-read once per column tile).
            grid = (nc, nb)
            x_spec = pl.BlockSpec((TB, N), lambda j, i: (i, 0))
            w_spec = pl.BlockSpec((N, TN), lambda j, i: (0, j))
            b_spec = pl.BlockSpec((1, TN), lambda j, i: (0, j))
            o_spec = pl.BlockSpec((TB, TN), lambda j, i: (i, j))
            dims = ("parallel", "parallel")

        in_specs = [x_spec, w_spec] + ([b_spec] if has_bias else [])
        return pl.pallas_call(
            kernel,
            out_shape=out_shape,
            grid=grid,
            in_specs=in_specs,
            out_specs=o_spec,
            compiler_params=pltpu.CompilerParams(
                dimension_semantics=dims,
                vmem_limit_bytes=vmem_limit,
            ),
        )(*args)

    if nc == 1 and single_buffer_resident:
        try:
            # Block inside the try so deferred compile errors surface here;
            # falls back to the default double-buffered resident weight.
            out = jax.block_until_ready(call(True))
        except Exception:
            out = call(False)
    else:
        out = call(False)

    if pad_n and not return_padded:
        # TODO(synk): consumers that can take the lane-padded (B, Np) layout
        # should pass return_padded=True and fuse this strip downstream.
        out = out[:, :N]
    return out


def _reference(x, inverse_matrix, biases):
    r = x @ inverse_matrix.T
    if biases is not None:
        r = r - biases
    return r


if __name__ == "__main__":
    key = jax.random.PRNGKey(0)
    kw, kb, kx, kx2 = jax.random.split(key, 4)

    # Small shapes consistent with the module: a square N x N linear layer.
    B, N = 8, 32
    weight = jnp.eye(N, dtype=jnp.float32) \
        + 0.1 * jax.random.normal(kw, (N, N), jnp.float32)
    biases = jax.random.normal(kb, (N,), jnp.float32)
    x = jax.random.normal(kx, (B, N), jnp.float32)

    # TODO(synk): the PyTorch forward's `.to('cuda')` device move has no Pallas
    # equivalent; inputs are assumed already on the default (TPU) device.
    inverse_matrix, biases = init_inverse_linear(weight, biases)

    out = jax.block_until_ready(inverse_linear_forward(x, inverse_matrix, biases))
    ref = _reference(x, inverse_matrix, biases)
    assert out.shape == (B, N), out.shape
    assert jnp.allclose(out, ref, atol=1e-4, rtol=1e-4), \
        float(jnp.max(jnp.abs(out - ref)))

    # Second config: no bias, ragged batch (exercises the un-padded batch grid
    # with a masked last block and >=2 grid steps).
    B2 = 20
    x2 = jax.random.normal(kx2, (B2, N), jnp.float32)
    out2 = jax.block_until_ready(inverse_linear_forward(x2, inverse_matrix, None))
    ref2 = _reference(x2, inverse_matrix, None)
    assert out2.shape == (B2, N), out2.shape
    assert jnp.allclose(out2, ref2, atol=1e-4, rtol=1e-4), \
        float(jnp.max(jnp.abs(out2 - ref2)))

    print("KERNEL_OK")
</pallas_src>

<mosaic_0001>
module attributes {stable_mosaic.version = 11 : i64} {
  func.func @_inv_linear_bias_kernel(%arg0: i32, %arg1: memref<8x32xf32, #tpu.memory_space<vmem>>, %arg2: memref<32x128xf32, #tpu.memory_space<vmem>>, %arg3: memref<1x128xf32, #tpu.memory_space<vmem>>, %arg4: memref<8x128xf32, #tpu.memory_space<vmem>>) attributes {dimension_semantics = [#tpu.dimension_semantics<parallel>], iteration_bounds = array<i64: 1>, scalar_prefetch = 0 : i64, scratch_operands = 0 : i64, tpu.core_type = #tpu.core_type<tc>, window_params = [{transform_indices = @transform_0, window_bounds = array<i64: 8, 32>}, {pipeline_mode = #tpu.pipeline_mode<synchronous>, transform_indices = @transform_1, window_bounds = array<i64: 32, 128>}, {pipeline_mode = #tpu.pipeline_mode<synchronous>, transform_indices = @transform_2, window_bounds = array<i64: 1, 128>}, {transform_indices = @transform_3, window_bounds = array<i64: 8, 128>}]} {
    %c0 = arith.constant 0 : index
    %c0_0 = arith.constant 0 : index
    %0 = vector.load %arg1[%c0, %c0_0] : memref<8x32xf32, #tpu.memory_space<vmem>>, vector<8x32xf32>
    %c0_1 = arith.constant 0 : index
    %c0_2 = arith.constant 0 : index
    %1 = vector.load %arg2[%c0_1, %c0_2] : memref<32x128xf32, #tpu.memory_space<vmem>>, vector<32x128xf32>
    %cst = arith.constant dense<0.000000e+00> : vector<8x128xf32>
    %2 = tpu.matmul %0, %1, %cst {dimension_numbers = #tpu.dot_dimension_numbers<[1], [0], [0], [1], [0, 0, 1, 1], [], []>} : vector<8x32xf32>, vector<32x128xf32>, vector<8x128xf32> -> vector<8x128xf32>
    %c0_3 = arith.constant 0 : index
    %c0_4 = arith.constant 0 : index
    %3 = vector.load %arg3[%c0_3, %c0_4] : memref<1x128xf32, #tpu.memory_space<vmem>>, vector<1x128xf32>
    %4 = vector.broadcast %3 : vector<1x128xf32> to vector<8x128xf32>
    %5 = arith.subf %2, %4 : vector<8x128xf32>
    %c0_5 = arith.constant 0 : index
    %c0_6 = arith.constant 0 : index
    %6 = vector.load %arg4[%c0_5, %c0_6] : memref<8x128xf32, #tpu.memory_space<vmem>>, vector<8x128xf32>
    tpu.vector_store %arg4[%c0_5, %c0_6], %5 {strides = array<i32>} : memref<8x128xf32, #tpu.memory_space<vmem>>, vector<8x128xf32>,
    return
  }
  func.func @transform_0(%arg0: i32) -> (i32, i32) {
    %c0_i32 = arith.constant 0 : i32
    %c0_i32_0 = arith.constant 0 : i32
    return %arg0, %c0_i32 : i32, i32
  }
  func.func @transform_1(%arg0: i32) -> (i32, i32) {
    %c0_i32 = arith.constant 0 : i32
    %c0_i32_0 = arith.constant 0 : i32
    %c0_i32_1 = arith.constant 0 : i32
    return %c0_i32, %c0_i32_0 : i32, i32
  }
  func.func @transform_2(%arg0: i32) -> (i32, i32) {
    %c0_i32 = arith.constant 0 : i32
    %c0_i32_0 = arith.constant 0 : i32
    %c0_i32_1 = arith.constant 0 : i32
    return %c0_i32, %c0_i32_0 : i32, i32
  }
  func.func @transform_3(%arg0: i32) -> (i32, i32) {
    %c0_i32 = arith.constant 0 : i32
    %c0_i32_0 = arith.constant 0 : i32
    return %arg0, %c0_i32 : i32, i32
  }
}

module attributes {stable_mosaic.version = 11 : i64} {
  func.func @_inv_linear_bias_kernel(%arg0: i32, %arg1: memref<8x32xf32, #tpu.memory_space<vmem>>, %arg2: memref<32x128xf32, #tpu.memory_space<vmem>>, %arg3: memref<1x128xf32, #tpu.memory_space<vmem>>, %arg4: memref<8x128xf32, #tpu.memory_space<vmem>>) attributes {dimension_semantics = [#tpu.dimension_semantics<parallel>], iteration_bounds = array<i64: 1>, scalar_prefetch = 0 : i64, scratch_operands = 0 : i64, tpu.core_type = #tpu.core_type<tc>, window_params = [{transform_indices = @transform_0, window_bounds = array<i64: 8, 32>}, {pipeline_mode = #tpu.pipeline_mode<synchronous>, transform_indices = @transform_1, window_bounds = array<i64: 32, 128>}, {pipeline_mode = #tpu.pipeline_mode<synchronous>, transform_indices = @transform_2, window_bounds = array<i64: 1, 128>}, {transform_indices = @transform_3, window_bounds = array<i64: 8, 128>}]} {
    %c0 = arith.constant 0 : index
    %c0_0 = arith.constant 0 : index
    %0 = vector.load %arg1[%c0, %c0_0] : memref<8x32xf32, #tpu.memory_space<vmem>>, vector<8x32xf32>
    %c0_1 = arith.constant 0 : index
    %c0_2 = arith.constant 0 : index
    %1 = vector.load %arg2[%c0_1, %c0_2] : memref<32x128xf32, #tpu.memory_space<vmem>>, vector<32x128xf32>
    %cst = arith.constant dense<0.000000e+00> : vector<8x128xf32>
    %2 = tpu.matmul %0, %1, %cst {dimension_numbers = #tpu.dot_dimension_numbers<[1], [0], [0], [1], [0, 0, 1, 1], [], []>} : vector<8x32xf32>, vector<32x128xf32>, vector<8x128xf32> -> vector<8x128xf32>
    %c0_3 = arith.constant 0 : index
    %c0_4 = arith.constant 0 : index
    %3 = vector.load %arg3[%c0_3, %c0_4] : memref<1x128xf32, #tpu.memory_space<vmem>>, vector<1x128xf32>
    %4 = vector.broadcast %3 : vector<1x128xf32> to vector<8x128xf32>
    %5 = arith.subf %2, %4 : vector<8x128xf32>
    %c0_5 = arith.constant 0 : index
    %c0_6 = arith.constant 0 : index
    %6 = vector.load %arg4[%c0_5, %c0_6] : memref<8x128xf32, #tpu.memory_space<vmem>>, vector<8x128xf32>
    tpu.vector_store %arg4[%c0_5, %c0_6], %5 {strides = array<i32>} : memref<8x128xf32, #tpu.memory_space<vmem>>, vector<8x128xf32>,
    return
  }
  func.func @transform_0(%arg0: i32) -> (i32, i32) {
    %c0_i32 = arith.constant 0 : i32
    %c0_i32_0 = arith.constant 0 : i32
    return %arg0, %c0_i32 : i32, i32
  }
  func.func @transform_1(%arg0: i32) -> (i32, i32) {
    %c0_i32 = arith.constant 0 : i32
    %c0_i32_0 = arith.constant 0 : i32
    %c0_i32_1 = arith.constant 0 : i32
    return %c0_i32, %c0_i32_0 : i32, i32
  }
  func.func @transform_2(%arg0: i32) -> (i32, i32) {
    %c0_i32 = arith.constant 0 : i32
    %c0_i32_0 = arith.constant 0 : i32
    %c0_i32_1 = arith.constant 0 : i32
    return %c0_i32, %c0_i32_0 : i32, i32
  }
  func.func @transform_3(%arg0: i32) -> (i32, i32) {
    %c0_i32 = arith.constant 0 : i32
    %c0_i32_0 = arith.constant 0 : i32
    return %arg0, %c0_i32 : i32, i32
  }
}

</mosaic_0001>

<llo_original>
// kernel: tpu_custom_call.1
$region0: #{tpu_custom_call.1}
  #allocation0 [shape = 'u32[]', space=smem, size = 0x4, offset = 0x4, fixed_abs, tag = 'smem constant byte address 0x4 - core index']
  #allocation1 [shape = 'u32[144,128]{1,0:T(1,128)}', space=vmem, size = 0x12000, scoped, tag = 'internal scratch']
  %s0 = inlined_call_operand.hbm [shape: f32[8,32], index: 0, kind: input, shape index: {}]
  %s1 = inlined_call_operand.hbm [shape: f32[32,128], index: 1, kind: input, shape index: {}]
  %s2 = inlined_call_operand.vmem [shape: f32[1,128], index: 2, kind: input, shape index: {}]
  %s3 = inlined_call_operand.hbm [shape: f32[8,128], index: 3, kind: output, shape index: {}]
  %s4 = sld [smem:[#allocation0]]
  $region30: #{tpu_custom_call.1} parent=0
    _
  %s6 = ssub.s32 1, %s4
  %s7 = scalar_select 0, %s6, %s4
  $region1: #{tpu_custom_call.1} parent=0
    #allocation2 [shape = 'u8[4096]{0}', space=vmem, size = 0x1000, scoped, tag = 'input window, operand 0, single buffered']
    #allocation3 [shape = 's32[1]{0}', space=sflag, size = 0x4, scoped, tag = 'scoped memory for tpu_custom_call.1']
    #allocation4 [shape = 's32[1]{0}', space=sflag, size = 0x4, scoped, tag = 'scoped memory for tpu_custom_call.1']
    #allocation5 [shape = 'u8[16384]{0}', space=vmem, size = 0x4000, scoped, tag = 'input window, operand 1, single buffered']
    #allocation6 [shape = 's32[1]{0}', space=sflag, size = 0x4, scoped, tag = 'scoped memory for tpu_custom_call.1']
    #allocation7 [shape = 'u8[4096]{0}', space=vmem, size = 0x1000, scoped, tag = 'output window, operand 0, single buffered']
    %8 = vsyncpa [#allocation3], 0
    %9 = vsyncpa [#allocation6], 0
    %10 = vsyncpa [#allocation4], 0
    // Predicated region
    $region2: #{tpu_custom_call.1} parent=1 // pred_check
      _
    $region3: #{tpu_custom_call.1} parent=1 // pred_check_branch
      %12 = sbr.rel (0) target = $region5
    $region4: #{tpu_custom_call.1} parent=1 // pred_region
      %s14 = ssub.s32 128, 128
      %15 = vsyncadd [#allocation3], %s14
      %s17 = sshll.u32 [#allocation2], 4
      %s18 = int_to_ptr.vmem [resolvable:$true] %s17
      %20 = dma.hbm_to_vmem [thread:$0]  %s0, 128, %s18, [#allocation3]
    $region5: #{tpu_custom_call.1} parent=1 // pred_fallthru
      _
    // Predicated region
    $region6: #{tpu_custom_call.1} parent=1 // pred_check
      _
    $region7: #{tpu_custom_call.1} parent=1 // pred_check_branch
      %22 = sbr.rel (0) target = $region9
    $region8: #{tpu_custom_call.1} parent=1 // pred_region
      %s24 = ssub.s32 512, 512
      %25 = vsyncadd [#allocation6], %s24
      %s26 = sshll.u32 [#allocation5], 4
      %s27 = int_to_ptr.vmem [resolvable:$true] %s26
      %32 = dma.hbm_to_vmem [thread:$0]  %s1, 512, %s27, [#allocation6], 128, 128, 8
    $region9: #{tpu_custom_call.1} parent=1 // pred_fallthru
      _
    // Predicated region
    $region10: #{tpu_custom_call.1} parent=1 // pred_check
      _
    $region11: #{tpu_custom_call.1} parent=1 // pred_check_branch
      %34 = sbr.rel (0) target = $region13
    $region12: #{tpu_custom_call.1} parent=1 // pred_region
      _
    $region13: #{tpu_custom_call.1} parent=1 // pred_fallthru
      _
    // Predicated region
    $region14: #{tpu_custom_call.1} parent=1 // pred_check
      _
    $region15: #{tpu_custom_call.1} parent=1 // pred_check_branch
      %36 = sbr.rel (0) target = $region17
    $region16: #{tpu_custom_call.1} parent=1 // pred_region
      %37 = dma.done [#allocation3], 128
    $region17: #{tpu_custom_call.1} parent=1 // pred_fallthru
      _
    // Predicated region
    $region18: #{tpu_custom_call.1} parent=1 // pred_check
      _
    $region19: #{tpu_custom_call.1} parent=1 // pred_check_branch
      %39 = sbr.rel (0) target = $region21
    $region20: #{tpu_custom_call.1} parent=1 // pred_region
      %40 = dma.done [#allocation6], 512
    $region21: #{tpu_custom_call.1} parent=1 // pred_fallthru
      _
    %v41 = vld [vmem:[#allocation2] sm:$0xff]
    %v42 = vld [vmem:[#allocation5] sm:$0xff]
    %v43 = vld [vmem:[#allocation5 + $0x8] sm:$0xff]
    %v44 = vld [vmem:[#allocation5 + $0x10] sm:$0xff]
    %v45 = vld [vmem:[#allocation5 + $0x18] sm:$0xff]
    %vm46 = vcmask 261120
    %v48 = vsel %vm46, %v41, 0
    %50 = vmatprep.subr.mxu0 0.0
    %51 = vmatpush1.msra.mxu0 0.0
    %52 = vmatprep.subr.mxu0 0.0
    %53 = vmatpush1.msra.mxu0 0.0
    %54 = vmatprep.subr.mxu0 0.0
    %55 = vmatpush1.msra.mxu0 0.0
    %56 = vmatprep.subr.mxu0 0.0
    %57 = vmatpush1.msra.mxu0 0.0
    %58 = vmatprep.subr.mxu0 0.0
    %59 = vmatpush1.msra.mxu0 0.0
    %60 = vmatprep.subr.mxu0 0.0
    %61 = vmatpush1.msra.mxu0 0.0
    %62 = vmatprep.subr.mxu0 0.0
    %63 = vmatpush1.msra.mxu0 0.0
    %64 = vmatprep.subr.mxu0 0.0
    %65 = vmatpush1.msra.mxu0 0.0
    %66 = vmatprep.subr.mxu0 0.0
    %67 = vmatpush1.msra.mxu0 0.0
    %68 = vmatprep.subr.mxu0 0.0
    %69 = vmatpush1.msra.mxu0 0.0
    %70 = vmatprep.subr.mxu0 0.0
    %71 = vmatpush1.msra.mxu0 0.0
    %72 = vmatprep.subr.mxu0 0.0
    %73 = vmatpush1.msra.mxu0 0.0
    %74 = vmatprep.subr.mxu0 0.0
    %75 = vmatpush1.msra.mxu0 %v45
    %76 = vmatprep.subr.mxu0 0.0
    %77 = vmatpush1.msra.mxu0 %v44
    %78 = vmatprep.subr.mxu0 0.0
    %79 = vmatpush1.msra.mxu0 %v43
    %80 = vmatprep.subr.mxu0 0.0
    %81 = vmatpush1.msra.mxu0 %v42
    %82 = vmatprep.subr.mxu0 0.0
    %83 = vmatpush2.msra.mxu0 0.0
    %84 = vmatprep.subr.mxu0 0.0
    %85 = vmatpush2.msra.mxu0 0.0
    %86 = vmatprep.subr.mxu0 0.0
    %87 = vmatpush2.msra.mxu0 0.0
    %88 = vmatprep.subr.mxu0 0.0
    %89 = vmatpush2.msra.mxu0 0.0
    %90 = vmatprep.subr.mxu0 0.0
    %91 = vmatpush2.msra.mxu0 0.0
    %92 = vmatprep.subr.mxu0 0.0
    %93 = vmatpush2.msra.mxu0 0.0
    %94 = vmatprep.subr.mxu0 0.0
    %95 = vmatpush2.msra.mxu0 0.0
    %96 = vmatprep.subr.mxu0 0.0
    %97 = vmatpush2.msra.mxu0 0.0
    %98 = vmatprep.subr.mxu0 0.0
    %99 = vmatpush2.msra.mxu0 0.0
    %100 = vmatprep.subr.mxu0 0.0
    %101 = vmatpush2.msra.mxu0 0.0
    %102 = vmatprep.subr.mxu0 0.0
    %103 = vmatpush2.msra.mxu0 0.0
    %104 = vmatprep.subr.mxu0 0.0
    %105 = vmatpush2.msra.mxu0 0.0
    %106 = vmatprep.subr.mxu0 0.0
    %107 = vmatpush2.msra.mxu0 0.0
    %108 = vmatprep.subr.mxu0 0.0
    %109 = vmatpush2.msra.mxu0 0.0
    %110 = vmatprep.subr.mxu0 0.0
    %111 = vmatpush2.msra.mxu0 0.0
    %112 = vmatprep.subr.mxu0 0.0
    %113 = vmatpush2.msra.mxu0 0.0
    %114 = vmatprep.mubr.f32.mxu0 0.0
    %115 = vmatmul.mubr.f32.gmra.mxu0 %v48
    %v116 = vpop.f32.mrf.mxu0
    %v117 = vadd.f32 0.0, %v116
    %v118 = vpop.f32.mrf.mxu0
    %119 = vdwg.mxu0
    %v120 = vld [vmem:[%s2] sm:$0x1]
    %v122 = vlaneseq
    %v123 = vshrl.u32 %v122, 7
    %v124 = vsub.s32 0, %v123
    %v125 = vrot.slane %v120, %v124
    %v127 = vsub.f32 %v117, %v125
    %128 = vst [vmem:[#allocation7] sm:$0xff] %v127
    // Predicated region
    $region22: #{tpu_custom_call.1} parent=1 // pred_check
      _
    $region23: #{tpu_custom_call.1} parent=1 // pred_check_branch
      %130 = sbr.rel (0) target = $region25
    $region24: #{tpu_custom_call.1} parent=1 // pred_region
      %s132 = ssub.s32 128, 128
      %133 = vsyncadd [#allocation4], %s132
      %s135 = sshll.u32 [#allocation7], 4
      %s136 = int_to_ptr.vmem [resolvable:$true] %s135
      %138 = dma.vmem_to_hbm [thread:$0]  %s136, 128, %s3, [#allocation4]
    $region25: #{tpu_custom_call.1} parent=1 // pred_fallthru
      _
    // Predicated region
    $region26: #{tpu_custom_call.1} parent=1 // pred_check
      _
    $region27: #{tpu_custom_call.1} parent=1 // pred_check_branch
      %140 = sbr.rel (0) target = $region29
    $region28: #{tpu_custom_call.1} parent=1 // pred_region
      %141 = dma.done [#allocation4], 128
    $region29: #{tpu_custom_call.1} parent=1 // pred_fallthru
      _
    %142 = vsyncpa [#allocation3], 1
    %143 = vsyncpa [#allocation6], 1
    %144 = vsyncpa [#allocation4], 1

// kernel: tpu_custom_call.1
$region0: #{tpu_custom_call.1}
  #allocation0 [shape = 'u32[]', space=smem, size = 0x4, offset = 0x4, fixed_abs, tag = 'smem constant byte address 0x4 - core index']
  #allocation1 [shape = 'u32[144,128]{1,0:T(1,128)}', space=vmem, size = 0x12000, scoped, tag = 'internal scratch']
  %s0 = inlined_call_operand.hbm [shape: f32[8,32], index: 0, kind: input, shape index: {}]
  %s1 = inlined_call_operand.hbm [shape: f32[32,128], index: 1, kind: input, shape index: {}]
  %s2 = inlined_call_operand.vmem [shape: f32[1,128], index: 2, kind: input, shape index: {}]
  %s3 = inlined_call_operand.hbm [shape: f32[8,128], index: 3, kind: output, shape index: {}]
  %s4 = sld [smem:[#allocation0]]
  $region30: #{tpu_custom_call.1} parent=0
    _
  %s6 = ssub.s32 1, %s4
  %s7 = scalar_select 0, %s6, %s4
  $region1: #{tpu_custom_call.1} parent=0
    #allocation2 [shape = 'u8[4096]{0}', space=vmem, size = 0x1000, scoped, tag = 'input window, operand 0, single buffered']
    #allocation3 [shape = 's32[1]{0}', space=sflag, size = 0x4, scoped, tag = 'scoped memory for tpu_custom_call.1']
    #allocation4 [shape = 's32[1]{0}', space=sflag, size = 0x4, scoped, tag = 'scoped memory for tpu_custom_call.1']
    #allocation5 [shape = 'u8[16384]{0}', space=vmem, size = 0x4000, scoped, tag = 'input window, operand 1, single buffered']
    #allocation6 [shape = 's32[1]{0}', space=sflag, size = 0x4, scoped, tag = 'scoped memory for tpu_custom_call.1']
    #allocation7 [shape = 'u8[4096]{0}', space=vmem, size = 0x1000, scoped, tag = 'output window, operand 0, single buffered']
    %8 = vsyncpa [#allocation3], 0
    %9 = vsyncpa [#allocation6], 0
    %10 = vsyncpa [#allocation4], 0
    // Predicated region
    $region2: #{tpu_custom_call.1} parent=1 // pred_check
      _
    $region3: #{tpu_custom_call.1} parent=1 // pred_check_branch
      %12 = sbr.rel (0) target = $region5
    $region4: #{tpu_custom_call.1} parent=1 // pred_region
      %s14 = ssub.s32 128, 128
      %15 = vsyncadd [#allocation3], %s14
      %s17 = sshll.u32 [#allocation2], 4
      %s18 = int_to_ptr.vmem [resolvable:$true] %s17
      %20 = dma.hbm_to_vmem [thread:$0]  %s0, 128, %s18, [#allocation3]
    $region5: #{tpu_custom_call.1} parent=1 // pred_fallthru
      _
    // Predicated region
    $region6: #{tpu_custom_call.1} parent=1 // pred_check
      _
    $region7: #{tpu_custom_call.1} parent=1 // pred_check_branch
      %22 = sbr.rel (0) target = $region9
    $region8: #{tpu_custom_call.1} parent=1 // pred_region
      %s24 = ssub.s32 512, 512
      %25 = vsyncadd [#allocation6], %s24
      %s26 = sshll.u32 [#allocation5], 4
      %s27 = int_to_ptr.vmem [resolvable:$true] %s26
      %32 = dma.hbm_to_vmem [thread:$0]  %s1, 512, %s27, [#allocation6], 128, 128, 8
    $region9: #{tpu_custom_call.1} parent=1 // pred_fallthru
      _
    // Predicated region
    $region10: #{tpu_custom_call.1} parent=1 // pred_check
      _
    $region11: #{tpu_custom_call.1} parent=1 // pred_check_branch
      %34 = sbr.rel (0) target = $region13
    $region12: #{tpu_custom_call.1} parent=1 // pred_region
      _
    $region13: #{tpu_custom_call.1} parent=1 // pred_fallthru
      _
    // Predicated region
    $region14: #{tpu_custom_call.1} parent=1 // pred_check
      _
    $region15: #{tpu_custom_call.1} parent=1 // pred_check_branch
      %36 = sbr.rel (0) target = $region17
    $region16: #{tpu_custom_call.1} parent=1 // pred_region
      %37 = dma.done [#allocation3], 128
    $region17: #{tpu_custom_call.1} parent=1 // pred_fallthru
      _
    // Predicated region
    $region18: #{tpu_custom_call.1} parent=1 // pred_check
      _
    $region19: #{tpu_custom_call.1} parent=1 // pred_check_branch
      %39 = sbr.rel (0) target = $region21
    $region20: #{tpu_custom_call.1} parent=1 // pred_region
      %40 = dma.done [#allocation6], 512
    $region21: #{tpu_custom_call.1} parent=1 // pred_fallthru
      _
    %v41 = vld [vmem:[#allocation2] sm:$0xff]
    %v42 = vld [vmem:[#allocation5] sm:$0xff]
    %v43 = vld [vmem:[#allocation5 + $0x8] sm:$0xff]
    %v44 = vld [vmem:[#allocation5 + $0x10] sm:$0xff]
    %v45 = vld [vmem:[#allocation5 + $0x18] sm:$0xff]
    %vm46 = vcmask 261120
    %v48 = vsel %vm46, %v41, 0
    %50 = vmatprep.subr.mxu0 0.0
    %51 = vmatpush1.msra.mxu0 0.0
    %52 = vmatprep.subr.mxu0 0.0
    %53 = vmatpush1.msra.mxu0 0.0
    %54 = vmatprep.subr.mxu0 0.0
    %55 = vmatpush1.msra.mxu0 0.0
    %56 = vmatprep.subr.mxu0 0.0
    %57 = vmatpush1.msra.mxu0 0.0
    %58 = vmatprep.subr.mxu0 0.0
    %59 = vmatpush1.msra.mxu0 0.0
    %60 = vmatprep.subr.mxu0 0.0
    %61 = vmatpush1.msra.mxu0 0.0
    %62 = vmatprep.subr.mxu0 0.0
    %63 = vmatpush1.msra.mxu0 0.0
    %64 = vmatprep.subr.mxu0 0.0
    %65 = vmatpush1.msra.mxu0 0.0
    %66 = vmatprep.subr.mxu0 0.0
    %67 = vmatpush1.msra.mxu0 0.0
    %68 = vmatprep.subr.mxu0 0.0
    %69 = vmatpush1.msra.mxu0 0.0
    %70 = vmatprep.subr.mxu0 0.0
    %71 = vmatpush1.msra.mxu0 0.0
    %72 = vmatprep.subr.mxu0 0.0
    %73 = vmatpush1.msra.mxu0 0.0
    %74 = vmatprep.subr.mxu0 0.0
    %75 = vmatpush1.msra.mxu0 %v45
    %76 = vmatprep.subr.mxu0 0.0
    %77 = vmatpush1.msra.mxu0 %v44
    %78 = vmatprep.subr.mxu0 0.0
    %79 = vmatpush1.msra.mxu0 %v43
    %80 = vmatprep.subr.mxu0 0.0
    %81 = vmatpush1.msra.mxu0 %v42
    %82 = vmatprep.subr.mxu0 0.0
    %83 = vmatpush2.msra.mxu0 0.0
    %84 = vmatprep.subr.mxu0 0.0
    %85 = vmatpush2.msra.mxu0 0.0
    %86 = vmatprep.subr.mxu0 0.0
    %87 = vmatpush2.msra.mxu0 0.0
    %88 = vmatprep.subr.mxu0 0.0
    %89 = vmatpush2.msra.mxu0 0.0
    %90 = vmatprep.subr.mxu0 0.0
    %91 = vmatpush2.msra.mxu0 0.0
    %92 = vmatprep.subr.mxu0 0.0
    %93 = vmatpush2.msra.mxu0 0.0
    %94 = vmatprep.subr.mxu0 0.0
    %95 = vmatpush2.msra.mxu0 0.0
    %96 = vmatprep.subr.mxu0 0.0
    %97 = vmatpush2.msra.mxu0 0.0
    %98 = vmatprep.subr.mxu0 0.0
    %99 = vmatpush2.msra.mxu0 0.0
    %100 = vmatprep.subr.mxu0 0.0
    %101 = vmatpush2.msra.mxu0 0.0
    %102 = vmatprep.subr.mxu0 0.0
    %103 = vmatpush2.msra.mxu0 0.0
    %104 = vmatprep.subr.mxu0 0.0
    %105 = vmatpush2.msra.mxu0 0.0
    %106 = vmatprep.subr.mxu0 0.0
    %107 = vmatpush2.msra.mxu0 0.0
    %108 = vmatprep.subr.mxu0 0.0
    %109 = vmatpush2.msra.mxu0 0.0
    %110 = vmatprep.subr.mxu0 0.0
    %111 = vmatpush2.msra.mxu0 0.0
    %112 = vmatprep.subr.mxu0 0.0
    %113 = vmatpush2.msra.mxu0 0.0
    %114 = vmatprep.mubr.f32.mxu0 0.0
    %115 = vmatmul.mubr.f32.gmra.mxu0 %v48
    %v116 = vpop.f32.mrf.mxu0
    %v117 = vadd.f32 0.0, %v116
    %v118 = vpop.f32.mrf.mxu0
    %119 = vdwg.mxu0
    %v120 = vld [vmem:[%s2] sm:$0x1]
    %v122 = vlaneseq
    %v123 = vshrl.u32 %v122, 7
    %v124 = vsub.s32 0, %v123
    %v125 = vrot.slane %v120, %v124
    %v127 = vsub.f32 %v117, %v125
    %128 = vst [vmem:[#allocation7] sm:$0xff] %v127
    // Predicated region
    $region22: #{tpu_custom_call.1} parent=1 // pred_check
      _
    $region23: #{tpu_custom_call.1} parent=1 // pred_check_branch
      %130 = sbr.rel (0) target = $region25
    $region24: #{tpu_custom_call.1} parent=1 // pred_region
      %s132 = ssub.s32 128, 128
      %133 = vsyncadd [#allocation4], %s132
      %s135 = sshll.u32 [#allocation7], 4
      %s136 = int_to_ptr.vmem [resolvable:$true] %s135
      %138 = dma.vmem_to_hbm [thread:$0]  %s136, 128, %s3, [#allocation4]
    $region25: #{tpu_custom_call.1} parent=1 // pred_fallthru
      _
    // Predicated region
    $region26: #{tpu_custom_call.1} parent=1 // pred_check
      _
    $region27: #{tpu_custom_call.1} parent=1 // pred_check_branch
      %140 = sbr.rel (0) target = $region29
    $region28: #{tpu_custom_call.1} parent=1 // pred_region
      %141 = dma.done [#allocation4], 128
    $region29: #{tpu_custom_call.1} parent=1 // pred_fallthru
      _
    %142 = vsyncpa [#allocation3], 1
    %143 = vsyncpa [#allocation6], 1
    %144 = vsyncpa [#allocation4], 1

</llo_original>
